<compile_context>
chip_gen: v7x
topology: tpu7x:2x2x1
jax: 0.10.0
libtpu: 0.0.40
codegen_flags: <defaults>
</compile_context>

<pallas_src>
import jax
import jax.numpy as jnp
from jax.experimental import pallas as pl
from jax.experimental.pallas import tpu as pltpu


def _round_up(x, m):
    return ((x + m - 1) // m) * m


def _pad_to(arr, shape):
    pads = [(0, s - d) for d, s in zip(arr.shape, shape)]
    return jnp.pad(arr, pads)


def _make_layer_kernel(deg_col):
    """Build the per-layer kernel.

    deg_col: static int column of acc_rel that holds the in-degree (ones-column
    written into the XW padding -> degree comes out of the MXU for free), or
    None to fall back to an explicit row-sum of the A tile (only needed when
    Fout is already a multiple of 128 and there is no padded column to spare).

    grid = (dst_tiles [parallel], R [arbitrary], src_tiles [arbitrary]).
    a_ref    : (1,1,1,tm,tk)  pre-tiled relation-adjacency tile (int8 0/1)
    xw_ref   : (1, tk, F_pad) precomputed (X @ W_r) tile (bf16)
    bsum_ref : (1, F_pad)     sum_r b_r (f32), added once at finalize
    out_ref  : (tm, F_pad)    f32 output block, VMEM-resident across (r, k);
                              doubles as the over-relations accumulator
    acc_rel  : VMEM (tm, F_pad) f32 — per-relation A_r @ XW_r accumulator
    """
    if deg_col is not None:

        def kernel(a_ref, xw_ref, bsum_ref, out_ref, acc_rel):
            r, k = pl.program_id(1), pl.program_id(2)
            nr, nk = pl.num_programs(1), pl.num_programs(2)

            @pl.when(jnp.logical_and(r == 0, k == 0))
            def _():
                out_ref[...] = jnp.zeros_like(out_ref)

            @pl.when(k == 0)
            def _():
                acc_rel[...] = jnp.zeros_like(acc_rel)

            # int8 0/1 -> bf16 is exact; cast hidden under the A DMA slack.
            a = a_ref[0, 0, 0].astype(jnp.bfloat16)
            acc_rel[...] += jnp.dot(a, xw_ref[0],
                                    preferred_element_type=jnp.float32)

            # Finalize this relation: degree = the ones-column of acc_rel.
            @pl.when(k == nk - 1)
            def _():
                acc = acc_rel[...]
                deg = acc[:, deg_col:deg_col + 1]
                inv = pl.reciprocal(jnp.maximum(deg, 1.0), approx=True)
                out_ref[...] += acc * inv

            # Finalize the layer: hoisted bias sum added once.
            @pl.when(jnp.logical_and(r == nr - 1, k == nk - 1))
            def _():
                out_ref[...] += bsum_ref[...]

        return kernel

    def kernel(a_ref, xw_ref, bsum_ref, out_ref, acc_rel, deg_acc):
        r, k = pl.program_id(1), pl.program_id(2)
        nr, nk = pl.num_programs(1), pl.num_programs(2)

        @pl.when(jnp.logical_and(r == 0, k == 0))
        def _():
            out_ref[...] = jnp.zeros_like(out_ref)

        @pl.when(k == 0)
        def _():
            acc_rel[...] = jnp.zeros_like(acc_rel)
            deg_acc[...] = jnp.zeros_like(deg_acc)

        a = a_ref[0, 0, 0].astype(jnp.bfloat16)
        acc_rel[...] += jnp.dot(a, xw_ref[0],
                                preferred_element_type=jnp.float32)
        deg_acc[...] += jnp.sum(a.astype(jnp.float32), axis=-1, keepdims=True)

        @pl.when(k == nk - 1)
        def _():
            inv = pl.reciprocal(jnp.maximum(deg_acc[...], 1.0), approx=True)
            out_ref[...] += acc_rel[...] * inv

        @pl.when(jnp.logical_and(r == nr - 1, k == nk - 1))
        def _():
            out_ref[...] += bsum_ref[...]

    return kernel


def _vmem_bytes(tm, tk, fpad):
    a = 2 * tm * tk * 1            # int8 A, double-buffered
    xw = 2 * tk * fpad * 2         # bf16 XW, double-buffered
    out = 2 * tm * fpad * 4        # f32 output block, double-buffered
    acc = tm * fpad * 4            # acc_rel
    deg = tm * 128 * 4             # fallback deg scratch upper bound
    return a + xw + out + acc + deg + (1 << 20)  # + slack


def _choose_tiles(N, fpad, max_tile):
    """Tile sizes shared by all layers. Large tiles (step overhead ~= A-tile
    DMA time at 512), 128-multiple, VMEM-budgeted; keep >= 2 dst tiles when N
    allows it so the 'parallel' axis can shard across the two v7x cores."""
    n128 = _round_up(N, 128)
    t = max(128, (min(max_tile, n128) // 128) * 128)
    n_pad = _round_up(N, t)
    tm, tk = t, t
    if n_pad // tm < 2:
        best = None
        m = 128
        while m * 2 <= t:
            if t % m == 0:
                best = m
            m += 128
        if best is not None:
            tm = best
    budget = 40 * 1024 * 1024   # comfortable on v5e/v6e (128 MiB) and v7x (64 MiB)
    while _vmem_bytes(tm, tk, fpad) > budget:
        if tm >= tk and tm % 256 == 0:
            tm //= 2
        elif tk % 256 == 0:
            tk //= 2
        elif tm % 256 == 0:
            tm //= 2
        else:
            break
    return tm, tk, n_pad


def hetero_gcn_layer(adj_t, xw_p, b_sum_p, *, tm, tk, deg_col):
    """adj_t: [R, n_i, n_k, tm, tk] int8; xw_p: [R, N_pad, F_pad] bf16;
    b_sum_p: [1, F_pad] f32. Returns [N_pad, F_pad] f32."""
    R, n_i, n_k, _, _ = adj_t.shape
    N_dst = n_i * tm
    N_src = n_k * tk
    F_pad = xw_p.shape[2]

    kernel = _make_layer_kernel(deg_col)
    scratch = [pltpu.VMEM((tm, F_pad), jnp.float32)]       # acc_rel
    if deg_col is None:
        scratch.append(pltpu.VMEM((tm, 1), jnp.float32))    # deg_acc fallback

    flops = 2 * R * N_dst * N_src * F_pad
    bytes_accessed = (R * N_dst * N_src * 1                 # A (int8)
                      + n_i * R * N_src * F_pad * 2         # XW re-read per dst tile (bf16)
                      + N_dst * F_pad * 4                   # output
                      + F_pad * 4)                          # bias

    return pl.pallas_call(
        kernel,
        out_shape=jax.ShapeDtypeStruct((N_dst, F_pad), jnp.float32),
        grid_spec=pltpu.PrefetchScalarGridSpec(
            num_scalar_prefetch=0,
            grid=(n_i, R, n_k),
            in_specs=[
                # Pre-tiled A: each tile is one contiguous HBM block.
                pl.BlockSpec((1, 1, 1, tm, tk), lambda i, r, k: (r, i, k, 0, 0)),
                pl.BlockSpec((1, tk, F_pad), lambda i, r, k: (r, k, 0)),
                pl.BlockSpec((1, F_pad), lambda i, r, k: (0, 0)),
            ],
            out_specs=pl.BlockSpec((tm, F_pad), lambda i, r, k: (i, 0)),
            scratch_shapes=scratch,
        ),
        compiler_params=pltpu.CompilerParams(
            # dst tiles parallel -> megacore sharding on v7x; R/src are reductions.
            dimension_semantics=("parallel", "arbitrary", "arbitrary"),
            vmem_limit_bytes=48 * 1024 * 1024,
        ),
        cost_estimate=pl.CostEstimate(
            flops=flops, transcendentals=0, bytes_accessed=bytes_accessed),
    )(adj_t, xw_p, b_sum_p)


def custom_rgcn_forward(adj, x, params, residual=False, return_list=False,
                        max_tile=2048):
    """Mirrors CustomRGCN.forward for encoder_type='GCN'.

    adj: [R, N, N] dense relation adjacencies (adj[r, i, j] = edge j -> i),
         assumed binary (0/1) — required for the exact int8/bf16 A path.
    x:   [N, in_feat] node features (single node type).
    params: list of (W [R, Fin, Fout], b [R, Fout]) per layer.
    Returns (x_final, output_list) like the torch module.
    """
    R, N, _ = adj.shape

    # Tile geometry shared by all layers (adjacency pre-tiled once).
    fpad_max = max(_round_up(w.shape[2], 128) for (w, _) in params)
    tm, tk, N_pad = _choose_tiles(N, fpad_max, max_tile)
    n_i, n_k = N_pad // tm, N_pad // tk

    # int8 0/1 adjacency: halves the dominant HBM stream; exact for binary A.
    # TODO(synk): gate the low-precision A path if edge weights become non-binary.
    adj_p = _pad_to(adj, (R, N_pad, N_pad)).astype(jnp.int8)
    adj_t = adj_p.reshape(R, n_i, tm, n_k, tk).transpose(0, 1, 3, 2, 4)

    # Keep x at N_pad rows across layers: padded rows never reach valid dst rows
    # (the padded A columns are zero); slice rows only at the very end.
    x_p = _pad_to(x.astype(jnp.float32), (N_pad, x.shape[1]))

    output_list = []
    for (w, b) in params:
        Fout = w.shape[2]
        F_pad = _round_up(Fout, 128)
        use_deg_col = F_pad > Fout

        # Algebraic reorder: (A@X/deg)@W == (A@(X@W))/deg  -> tiny precompute,
        # then ONE big N-contraction matmul per tile with a lane-dense output.
        xw = jnp.einsum('nf,rfo->rno', x_p, w).astype(jnp.bfloat16)  # [R,N_pad,Fout]
        parts = [xw]
        if use_deg_col:
            # Ones-column in the padding: in-degree falls out of the MXU for free.
            parts.append(jnp.ones((R, N_pad, 1), jnp.bfloat16))
        extra = F_pad - Fout - (1 if use_deg_col else 0)
        if extra:
            parts.append(jnp.zeros((R, N_pad, extra), jnp.bfloat16))
        xw_p = jnp.concatenate(parts, axis=-1) if len(parts) > 1 else parts[0]

        # Bias hoisted out of the relation loop: added once per layer.
        b_sum_p = _pad_to(jnp.sum(b, axis=0)[None, :].astype(jnp.float32),
                          (1, F_pad))

        h_p = hetero_gcn_layer(adj_t, xw_p, b_sum_p, tm=tm, tk=tk,
                               deg_col=(Fout if use_deg_col else None))
        h = h_p[:, :Fout]

        x_p = x_p + h if residual else h
        if return_list:
            output_list.append(x_p[:N])
    return x_p[:N], output_list


def _reference_forward(adj, x, params, residual=False):
    """Pure-JAX f32 reference for correctness checking."""
    deg = jnp.clip(adj.sum(axis=2, keepdims=True), 1.0, None)
    for (w, b) in params:
        h = 0.0
        for r in range(adj.shape[0]):
            agg = (adj[r] @ x) / deg[r]
            h = h + agg @ w[r] + b[r]
        x = x + h if residual else h
    return x


def _run_case(key, N, R, in_feat, hidden_feat, out_feat, max_tile):
    k_adj, k_x, k_w1, k_w2, k_b1, k_b2 = jax.random.split(key, 6)
    adj = (jax.random.uniform(k_adj, (R, N, N)) < 0.3).astype(jnp.float32)
    x = jax.random.normal(k_x, (N, in_feat), dtype=jnp.float32)
    w1 = jax.random.normal(k_w1, (R, in_feat, hidden_feat), jnp.float32) * 0.1
    b1 = jax.random.normal(k_b1, (R, hidden_feat), jnp.float32) * 0.1
    w2 = jax.random.normal(k_w2, (R, hidden_feat, out_feat), jnp.float32) * 0.1
    b2 = jax.random.normal(k_b2, (R, out_feat), jnp.float32) * 0.1
    params = [(w1, b1), (w2, b2)]

    out, _ = custom_rgcn_forward(adj, x, params, residual=False,
                                 return_list=False, max_tile=max_tile)
    out = jax.block_until_ready(out)
    ref = _reference_forward(adj, x, params, residual=False)
    assert out.shape == (N, out_feat)
    # bf16 inputs with f32 MXU accumulation + approx reciprocal: ~1e-3 error.
    assert jnp.allclose(out, ref, atol=1e-2, rtol=1e-2), "mismatch vs reference"


if __name__ == "__main__":
    key = jax.random.PRNGKey(0)
    k1, k2, k3 = jax.random.split(key, 3)

    # Small module-consistent shapes: in_feat=8, hidden=32, out=16, k=2 layers
    # (ones-column degree path, single tile).
    _run_case(k1, N=16, R=2, in_feat=8, hidden_feat=32, out_feat=16, max_tile=2048)
    # Exercise the tiled reduction path (2 dst tiles x 2 src tiles per relation).
    _run_case(k2, N=200, R=3, in_feat=8, hidden_feat=32, out_feat=16, max_tile=128)
    # Exercise the row-sum fallback (Fout already a multiple of 128).
    _run_case(k3, N=64, R=2, in_feat=8, hidden_feat=128, out_feat=128, max_tile=2048)

    # TODO(synk): non-'GCN' encoder variants (GAT/GIN/HGT/...) of the hetero
    # dispatch are not implemented; only the default GraphConv path is.
    print("KERNEL_OK")
</pallas_src>

<mosaic_0001>
module attributes {stable_mosaic.version = 11 : i64} {
  func.func @kernel(%arg0: i32, %arg1: i32, %arg2: i32, %arg3: memref<1x1x1x128x128xi8, #tpu.memory_space<vmem>>, %arg4: memref<1x128x128xbf16, #tpu.memory_space<vmem>>, %arg5: memref<1x128xf32, #tpu.memory_space<vmem>>, %arg6: memref<128x128xf32, #tpu.memory_space<vmem>>, %arg7: memref<128x128xf32, #tpu.memory_space<vmem>>) attributes {dimension_semantics = [#tpu.dimension_semantics<parallel>, #tpu.dimension_semantics<arbitrary>, #tpu.dimension_semantics<arbitrary>], iteration_bounds = array<i64: 1, 2, 1>, scalar_prefetch = 0 : i64, scratch_operands = 1 : i64, tpu.core_type = #tpu.core_type<tc>, window_params = [{transform_indices = @transform_0, window_bounds = array<i64: 1, 1, 1, 128, 128>}, {transform_indices = @transform_1, window_bounds = array<i64: 1, 128, 128>}, {pipeline_mode = #tpu.pipeline_mode<synchronous>, transform_indices = @transform_2, window_bounds = array<i64: 1, 128>}, {transform_indices = @transform_3, window_bounds = array<i64: 128, 128>}]} {
    %c0_i32 = arith.constant 0 : i32
    %0 = arith.cmpi eq, %arg1, %c0_i32 : i32
    %c0_i32_0 = arith.constant 0 : i32
    %1 = arith.cmpi eq, %arg2, %c0_i32_0 : i32
    %2 = arith.andi %0, %1 : i1
    %3 = arith.extui %2 : i1 to i32
    %c0_i32_1 = arith.constant 0 : i32
    %4 = arith.cmpi ne, %3, %c0_i32_1 : i32
    scf.if %4 {
      %cst_19 = arith.constant 0.000000e+00 : f32
      %25 = vector.broadcast %cst_19 : f32 to vector<128x128xf32>
      %c0_20 = arith.constant 0 : index
      %c0_21 = arith.constant 0 : index
      %26 = vector.load %arg6[%c0_20, %c0_21] : memref<128x128xf32, #tpu.memory_space<vmem>>, vector<128x128xf32>
      tpu.vector_store %arg6[%c0_20, %c0_21], %25 {strides = array<i32>} : memref<128x128xf32, #tpu.memory_space<vmem>>, vector<128x128xf32>,
    } else {
    }
    %c0_i32_2 = arith.constant 0 : i32
    %5 = arith.cmpi eq, %arg2, %c0_i32_2 : i32
    %6 = arith.extui %5 : i1 to i32
    %c0_i32_3 = arith.constant 0 : i32
    %7 = arith.cmpi ne, %6, %c0_i32_3 : i32
    scf.if %7 {
      %cst_19 = arith.constant 0.000000e+00 : f32
      %25 = vector.broadcast %cst_19 : f32 to vector<128x128xf32>
      %c0_20 = arith.constant 0 : index
      %c0_21 = arith.constant 0 : index
      %26 = vector.load %arg7[%c0_20, %c0_21] : memref<128x128xf32, #tpu.memory_space<vmem>>, vector<128x128xf32>
      tpu.vector_store %arg7[%c0_20, %c0_21], %25 {strides = array<i32>} : memref<128x128xf32, #tpu.memory_space<vmem>>, vector<128x128xf32>,
    } else {
    }
    %c0 = arith.constant 0 : index
    %c0_4 = arith.constant 0 : index
    %c0_5 = arith.constant 0 : index
    %c0_6 = arith.constant 0 : index
    %c0_7 = arith.constant 0 : index
    %8 = vector.load %arg3[%c0, %c0_4, %c0_5, %c0_6, %c0_7] : memref<1x1x1x128x128xi8, #tpu.memory_space<vmem>>, vector<1x1x1x128x128xi8>
    %9 = vector.shape_cast %8 : vector<1x1x1x128x128xi8> to vector<128x128xi8>
    %10 = arith.sitofp %9 : vector<128x128xi8> to vector<128x128xbf16>
    %c0_8 = arith.constant 0 : index
    %c0_9 = arith.constant 0 : index
    %11 = vector.load %arg7[%c0_8, %c0_9] : memref<128x128xf32, #tpu.memory_space<vmem>>, vector<128x128xf32>
    %c0_10 = arith.constant 0 : index
    %c0_11 = arith.constant 0 : index
    %c0_12 = arith.constant 0 : index
    %12 = vector.load %arg4[%c0_10, %c0_11, %c0_12] : memref<1x128x128xbf16, #tpu.memory_space<vmem>>, vector<1x128x128xbf16>
    %13 = vector.shape_cast %12 : vector<1x128x128xbf16> to vector<128x128xbf16>
    %cst = arith.constant dense<0.000000e+00> : vector<128x128xf32>
    %14 = tpu.matmul %10, %13, %cst {dimension_numbers = #tpu.dot_dimension_numbers<[1], [0], [0], [1], [0, 0, 1, 1], [], []>} : vector<128x128xbf16>, vector<128x128xbf16>, vector<128x128xf32> -> vector<128x128xf32>
    %15 = arith.addf %11, %14 : vector<128x128xf32>
    %c0_13 = arith.constant 0 : index
    %c0_14 = arith.constant 0 : index
    %16 = vector.load %arg7[%c0_13, %c0_14] : memref<128x128xf32, #tpu.memory_space<vmem>>, vector<128x128xf32>
    tpu.vector_store %arg7[%c0_13, %c0_14], %15 {strides = array<i32>} : memref<128x128xf32, #tpu.memory_space<vmem>>, vector<128x128xf32>,
    %c0_i32_15 = arith.constant 0 : i32
    %17 = arith.cmpi eq, %arg2, %c0_i32_15 : i32
    %18 = arith.extui %17 : i1 to i32
    %c0_i32_16 = arith.constant 0 : i32
    %19 = arith.cmpi ne, %18, %c0_i32_16 : i32
    scf.if %19 {
      %c0_19 = arith.constant 0 : index
      %c0_20 = arith.constant 0 : index
      %25 = vector.load %arg7[%c0_19, %c0_20] : memref<128x128xf32, #tpu.memory_space<vmem>>, vector<128x128xf32>
      %26 = vector.extract_strided_slice %25 {offsets = [0, 32], sizes = [128, 1], strides = [1, 1]} : vector<128x128xf32> to vector<128x1xf32>
      %cst_21 = arith.constant 1.000000e+00 : f32
      %27 = vector.broadcast %cst_21 : f32 to vector<128x1xf32>
      %28 = arith.maximumf %26, %27 : vector<128x1xf32>
      %29 = tpu.reciprocal %28 {approx = true} : vector<128x1xf32> -> vector<128x1xf32>
      %c0_22 = arith.constant 0 : index
      %c0_23 = arith.constant 0 : index
      %30 = vector.load %arg6[%c0_22, %c0_23] : memref<128x128xf32, #tpu.memory_space<vmem>>, vector<128x128xf32>
      %31 = vector.broadcast %29 : vector<128x1xf32> to vector<128x128xf32>
      %32 = arith.mulf %25, %31 : vector<128x128xf32>
      %33 = arith.addf %30, %32 : vector<128x128xf32>
      %c0_24 = arith.constant 0 : index
      %c0_25 = arith.constant 0 : index
      %34 = vector.load %arg6[%c0_24, %c0_25] : memref<128x128xf32, #tpu.memory_space<vmem>>, vector<128x128xf32>
      tpu.vector_store %arg6[%c0_24, %c0_25], %33 {strides = array<i32>} : memref<128x128xf32, #tpu.memory_space<vmem>>, vector<128x128xf32>,
    } else {
    }
    %c1_i32 = arith.constant 1 : i32
    %20 = arith.cmpi eq, %arg1, %c1_i32 : i32
    %c0_i32_17 = arith.constant 0 : i32
    %21 = arith.cmpi eq, %arg2, %c0_i32_17 : i32
    %22 = arith.andi %20, %21 : i1
    %23 = arith.extui %22 : i1 to i32
    %c0_i32_18 = arith.constant 0 : i32
    %24 = arith.cmpi ne, %23, %c0_i32_18 : i32
    scf.if %24 {
      %c0_19 = arith.constant 0 : index
      %c0_20 = arith.constant 0 : index
      %25 = vector.load %arg6[%c0_19, %c0_20] : memref<128x128xf32, #tpu.memory_space<vmem>>, vector<128x128xf32>
      %c0_21 = arith.constant 0 : index
      %c0_22 = arith.constant 0 : index
      %26 = vector.load %arg5[%c0_21, %c0_22] : memref<1x128xf32, #tpu.memory_space<vmem>>, vector<1x128xf32>
      %27 = vector.broadcast %26 : vector<1x128xf32> to vector<128x128xf32>
      %28 = arith.addf %25, %27 : vector<128x128xf32>
      %c0_23 = arith.constant 0 : index
      %c0_24 = arith.constant 0 : index
      %29 = vector.load %arg6[%c0_23, %c0_24] : memref<128x128xf32, #tpu.memory_space<vmem>>, vector<128x128xf32>
      tpu.vector_store %arg6[%c0_23, %c0_24], %28 {strides = array<i32>} : memref<128x128xf32, #tpu.memory_space<vmem>>, vector<128x128xf32>,
    } else {
    }
    return
  }
  func.func @transform_0(%arg0: i32, %arg1: i32, %arg2: i32) -> (i32, i32, i32, i32, i32) {
    %c0_i32 = arith.constant 0 : i32
    %c0_i32_0 = arith.constant 0 : i32
    %c0_i32_1 = arith.constant 0 : i32
    return %arg1, %arg0, %arg2, %c0_i32, %c0_i32_0 : i32, i32, i32, i32, i32
  }
  func.func @transform_1(%arg0: i32, %arg1: i32, %arg2: i32) -> (i32, i32, i32) {
    %c0_i32 = arith.constant 0 : i32
    %c0_i32_0 = arith.constant 0 : i32
    return %arg1, %arg2, %c0_i32 : i32, i32, i32
  }
  func.func @transform_2(%arg0: i32, %arg1: i32, %arg2: i32) -> (i32, i32) {
    %c0_i32 = arith.constant 0 : i32
    %c0_i32_0 = arith.constant 0 : i32
    %c0_i32_1 = arith.constant 0 : i32
    return %c0_i32, %c0_i32_0 : i32, i32
  }
  func.func @transform_3(%arg0: i32, %arg1: i32, %arg2: i32) -> (i32, i32) {
    %c0_i32 = arith.constant 0 : i32
    %c0_i32_0 = arith.constant 0 : i32
    return %arg0, %c0_i32 : i32, i32
  }
}

</mosaic_0001>

<llo_original>
// kernel: tpu_custom_call.1
$region0: #{tpu_custom_call.1}
  #allocation0 [shape = 'u32[]', space=smem, size = 0x4, offset = 0x4, fixed_abs, tag = 'smem constant byte address 0x4 - core index']
  #allocation1 [shape = 'u32[144,128]{1,0:T(1,128)}', space=vmem, size = 0x12000, scoped, tag = 'internal scratch']
  #allocation2 [shape = 'f32[128,128]{1,0:T(8,128)}', space=vmem, size = 0x10000, scoped, tag = 'scratch operand']
  %s0 = inlined_call_operand.hbm [shape: s8[2,1,1,128,128], index: 0, kind: input, shape index: {}]
  %s1 = inlined_call_operand.hbm [shape: bf16[2,128,128], index: 1, kind: input, shape index: {}]
  %s2 = inlined_call_operand.vmem [shape: f32[1,128], index: 2, kind: input, shape index: {}]
  %s3 = inlined_call_operand.hbm [shape: f32[128,128], index: 3, kind: output, shape index: {}]
  %s4 = sld [smem:[#allocation0]]
  $region69: #{tpu_custom_call.1} parent=0
    _
  %s6 = ssub.s32 1, %s4
  %s7 = scalar_select 0, %s6, %s4
  $region1: #{tpu_custom_call.1} parent=0
    #allocation3 [shape = 'u8[32768]{0}', space=vmem, size = 0x8000, scoped, tag = 'input window, operand 0']
    #allocation4 [shape = 's32[2]{0}', space=sflag, size = 0x8, scoped, tag = 'scoped memory for tpu_custom_call.1']
    #allocation5 [shape = 's32[2]{0}', space=sflag, size = 0x8, scoped, tag = 'scoped memory for tpu_custom_call.1']
    #allocation6 [shape = 'u8[65536]{0}', space=vmem, size = 0x10000, scoped, tag = 'input window, operand 1']
    #allocation7 [shape = 's32[2]{0}', space=sflag, size = 0x8, scoped, tag = 'scoped memory for tpu_custom_call.1']
    #allocation8 [shape = 'u8[65536]{0}', space=vmem, size = 0x10000, scoped, tag = 'output window, operand 0, single buffered']
    %8 = vsyncpa [#allocation4], 0
    %s9 = scalar_lea.sflag [#allocation4], 1
    %10 = vsyncpa %s9, 0
    %11 = vsyncpa [#allocation7], 0
    %s12 = scalar_lea.sflag [#allocation7], 1
    %13 = vsyncpa %s12, 0
    %14 = vsyncpa [#allocation5], 0
    loop: start=0, step=1, limit=4
    $region2: #{tpu_custom_call.1} parent=1 // loop_pre_header
      _
    $region3: #{tpu_custom_call.1} parent=1 // loop_header
      %s16 = sphi 0, %s20
      %p17 = scmp.ge.s32.totalorder %s16, 4
      %s23 = sphi 0, %s42
      %s24 = sphi 0, %s38
      %s25 = sphi 0, %s34
      %s26 = sphi 0, %s23
      %s27 = sphi 0, %s24
      %s28 = sphi 0, %s25
      %s29 = sphi 0, %s26
      %s30 = sphi 0, %s27
      %s31 = sphi 0, %s28
      %s49 = sphi 0, %s51
      %s52 = sphi 0, %s49
      %s53 = sphi 0, %s52
      %s69 = sphi 0, %s53
      %s77 = sphi 0, %s79
      %s80 = sphi 0, %s77
      %s81 = sphi 0, %s80
      %s97 = sphi 0, %s81
      %s101 = sphi 0, %s101
      %s103 = sphi 0, %s101
      %s104 = sphi 0, %s103
      %s118 = sphi 0, %s104
      %s124 = sphi 0, %s126
      %s127 = sphi 0, %s124
      %s128 = sphi 0, %s127
      %s144 = sphi 0, %s128
    $region4: #{tpu_custom_call.1} parent=1 // loop_header_branch
      %19 = sbr.rel (%p17) target = $region8
    $region5: #{tpu_custom_call.1} parent=1 // loop_body
      %s21 = ssub.s32 %s16, 1
      %s22 = ssub.s32 %s16, 2
      %s32 = sadd.s32 1, %s25
      %p33 = scmp.ge.s32.totalorder %s32, 1
      %s34 = scalar_select %p33, 0, %s32
      %s35 = sadd.s32 1, %s24
      %s36 = scalar_select %p33, %s35, %s24
      %p37 = scmp.ge.s32.totalorder %s36, 2
      %s38 = scalar_select %p37, 0, %s36
      %s39 = sadd.s32 1, %s23
      %s40 = scalar_select %p37, %s39, %s23
      %p41 = scmp.ge.s32.totalorder %s40, 1
      %s42 = scalar_select %p41, 0, %s40
      %s43 = ssub.s32 %s24, %s38
      %s44 = ssub.s32 %s23, %s42
      %s45 = sor.u32 %s43, %s44
      %s46 = ssub.s32 %s25, %s34
      %s47 = sor.u32 %s45, %s46
      %p48 = scmp.eq.s32.totalorder %s47, 0
      %s50 = sadd.s32 %s49, 1
      %s51 = scalar_select %p48, %s49, %s50
      %p54 = pneg %p48
      %p55 = scmp.eq.s32.totalorder %s16, 1
      %p56 = por %p54, %p55
      %p57 = scmp.ne.s32.totalorder %s49, %s52
      %p58 = scmp.eq.s32.totalorder %s16, 0
      %p59 = por %p57, %p58
      %p60 = scmp.ne.s32.totalorder %s49, %s52
      %p61 = scmp.eq.s32.totalorder %s21, 1
      %p62 = por %p60, %p61
      %p63 = scmp.ne.s32.totalorder %s52, %s53
      %p64 = scmp.eq.s32.totalorder %s21, 0
      %p65 = por %p63, %p64
      %p66 = scmp.ne.s32.totalorder %s52, %s53
      %p67 = scmp.eq.s32.totalorder %s22, 1
      %p68 = por %p66, %p67
      %p70 = scmp.ne.s32.totalorder %s53, %s69
      %p71 = scmp.eq.s32.totalorder %s22, 0
      %p72 = por %p70, %p71
      %s73 = ssub.s32 %s24, %s38
      %s74 = ssub.s32 %s25, %s34
      %s75 = sor.u32 %s73, %s74
      %p76 = scmp.eq.s32.totalorder %s75, 0
      %s78 = sadd.s32 %s77, 1
      %s79 = scalar_select %p76, %s77, %s78
      %p82 = pneg %p76
      %p83 = scmp.eq.s32.totalorder %s16, 1
      %p84 = por %p82, %p83
      %p85 = scmp.ne.s32.totalorder %s77, %s80
      %p86 = scmp.eq.s32.totalorder %s16, 0
      %p87 = por %p85, %p86
      %p88 = scmp.ne.s32.totalorder %s77, %s80
      %p89 = scmp.eq.s32.totalorder %s21, 1
      %p90 = por %p88, %p89
      %p91 = scmp.ne.s32.totalorder %s80, %s81
      %p92 = scmp.eq.s32.totalorder %s21, 0
      %p93 = por %p91, %p92
      %p94 = scmp.ne.s32.totalorder %s80, %s81
      %p95 = scmp.eq.s32.totalorder %s22, 1
      %p96 = por %p94, %p95
      %p98 = scmp.ne.s32.totalorder %s81, %s97
      %p99 = scmp.eq.s32.totalorder %s22, 0
      %p100 = por %p98, %p99
      %s102 = sadd.s32 %s101, 1
      %p105 = scmp.eq.s32.totalorder %s16, 1
      %p106 = scmp.ne.s32.totalorder %s101, %s103
      %p107 = scmp.eq.s32.totalorder %s16, 0
      %p108 = por %p106, %p107
      %p109 = scmp.ne.s32.totalorder %s101, %s103
      %p110 = scmp.eq.s32.totalorder %s21, 1
      %p111 = por %p109, %p110
      %p112 = scmp.ne.s32.totalorder %s103, %s104
      %p113 = scmp.eq.s32.totalorder %s21, 0
      %p114 = por %p112, %p113
      %p115 = scmp.ne.s32.totalorder %s103, %s104
      %p116 = scmp.eq.s32.totalorder %s22, 1
      %p117 = por %p115, %p116
      %p119 = scmp.ne.s32.totalorder %s104, %s118
      %p120 = scmp.eq.s32.totalorder %s22, 0
      %p121 = por %p119, %p120
      %s122 = ssub.s32 %s23, %s42
      %p123 = scmp.eq.s32.totalorder %s122, 0
      %s125 = sadd.s32 %s124, 1
      %s126 = scalar_select %p123, %s124, %s125
      %p129 = pneg %p123
      %p130 = scmp.eq.s32.totalorder %s16, 1
      %p131 = por %p129, %p130
      %p132 = scmp.ne.s32.totalorder %s124, %s127
      %p133 = scmp.eq.s32.totalorder %s16, 0
      %p134 = por %p132, %p133
      %p135 = scmp.ne.s32.totalorder %s124, %s127
      %p136 = scmp.eq.s32.totalorder %s21, 1
      %p137 = por %p135, %p136
      %p138 = scmp.ne.s32.totalorder %s127, %s128
      %p139 = scmp.eq.s32.totalorder %s21, 0
      %p140 = por %p138, %p139
      %p141 = scmp.ne.s32.totalorder %s127, %s128
      %p142 = scmp.eq.s32.totalorder %s22, 1
      %p143 = por %p141, %p142
      %p145 = scmp.ne.s32.totalorder %s128, %s144
      %p146 = scmp.eq.s32.totalorder %s22, 0
      %p147 = por %p145, %p146
      %p148 = scmp.le.s32.totalorder 1, %s16
      %p149 = scmp.lt.s32.totalorder %s16, 3
      %p150 = pnand %p148, %p149
      %p151 = pneg %p150
      // Predicated region
      $region9: #{tpu_custom_call.1} parent=5 // pred_check
        _
      $region10: #{tpu_custom_call.1} parent=5 // pred_check_branch
        %153 = sbr.rel (%p150) target = $region12
      $region11: #{tpu_custom_call.1} parent=5 // pred_region
        %s154 = ssub.s32 %s16, 1
        // Predicated region
        $region13: #{tpu_custom_call.1} parent=11 // pred_check
          %p155 = pneg %p114
        $region14: #{tpu_custom_call.1} parent=11 // pred_check_branch
          %157 = sbr.rel (%p155) target = $region16
        $region15: #{tpu_custom_call.1} parent=11 // pred_region
          _
        $region16: #{tpu_custom_call.1} parent=11 // pred_fallthru
          _
      $region12: #{tpu_custom_call.1} parent=5 // pred_fallthru
        _
      %p158 = scmp.lt.s32.totalorder %s16, 2
      // Predicated region
      $region17: #{tpu_custom_call.1} parent=5 // pred_check
        %p159 = pneg %p158
      $region18: #{tpu_custom_call.1} parent=5 // pred_check_branch
        %161 = sbr.rel (%p159) target = $region20
      $region19: #{tpu_custom_call.1} parent=5 // pred_region
        // Predicated region
        $region21: #{tpu_custom_call.1} parent=19 // pred_check
          %p162 = pneg %p59
        $region22: #{tpu_custom_call.1} parent=19 // pred_check_branch
          %164 = sbr.rel (%p162) target = $region24
        $region23: #{tpu_custom_call.1} parent=19 // pred_region
          %s165 = sand.u32 %s49, 1
          %s166 = scalar_lea.sflag [#allocation4], %s165
          %s167 = sand.u32 %s49, 1
          %s168 = smul.addr %s167, 32
          %s169 = scalar_lea.vmem [#allocation3], %s168
          %s171 = ssub.s32 512, 512
          %172 = vsyncadd %s166, %s171
          %s173 = smul.addr %s25, 4
          %s174 = smul.addr %s23, 4
          %s175 = sadd.s32 %s173, %s174
          %s176 = smul.addr %s24, 4
          %s177 = sadd.s32 %s175, %s176
          %s178 = smul.addr %s177, 128
          %s179 = scalar_lea.hbm %s0, %s178
          %s180 = sshll.u32 %s169, 4
          %s181 = int_to_ptr.vmem [resolvable:$true] %s180
          %186 = dma.hbm_to_vmem [thread:$0]  %s179, 512, %s181, %s166, 128, 128, 8
        $region24: #{tpu_custom_call.1} parent=19 // pred_fallthru
          _
        // Predicated region
        $region25: #{tpu_custom_call.1} parent=19 // pred_check
          %p187 = pneg %p87
        $region26: #{tpu_custom_call.1} parent=19 // pred_check_branch
          %189 = sbr.rel (%p187) target = $region28
        $region27: #{tpu_custom_call.1} parent=19 // pred_region
          %s190 = sand.u32 %s77, 1
          %s191 = scalar_lea.sflag [#allocation7], %s190
          %s192 = sand.u32 %s77, 1
          %s193 = smul.addr %s192, 64
          %s194 = scalar_lea.vmem [#allocation6], %s193
          %s195 = smul.u32 16, %s25
          %s197 = ssub.s32 1024, 1024
          %198 = vsyncadd %s191, %s197
          %s199 = smul.addr %s24, 16
          %s200 = sadd.s32 %s195, %s199
          %s201 = smul.addr %s200, 64
          %s202 = scalar_lea.hbm %s1, %s201
          %s203 = sshll.u32 %s194, 4
          %s204 = int_to_ptr.vmem [resolvable:$true] %s203
          %209 = dma.hbm_to_vmem [thread:$0]  %s202, 1024, %s204, %s191, 64, 64, 4
        $region28: #{tpu_custom_call.1} parent=19 // pred_fallthru
          _
      $region20: #{tpu_custom_call.1} parent=5 // pred_fallthru
        _
      %p210 = scmp.le.s32.totalorder 1, %s16
      %p211 = scmp.lt.s32.totalorder %s16, 3
      %p212 = pnand %p210, %p211
      %p213 = pneg %p212
      // Predicated region
      $region29: #{tpu_custom_call.1} parent=5 // pred_check
        _
      $region30: #{tpu_custom_call.1} parent=5 // pred_check_branch
        %215 = sbr.rel (%p212) target = $region32
      $region31: #{tpu_custom_call.1} parent=5 // pred_region
        %s216 = ssub.s32 %s16, 1
        %s217 = sand.u32 %s52, 1
        %s218 = scalar_lea.sflag [#allocation4], %s217
        %s219 = sand.u32 %s52, 1
        %s220 = smul.addr %s219, 32
        %s221 = scalar_lea.vmem [#allocation3], %s220
        // Predicated region
        $region33: #{tpu_custom_call.1} parent=31 // pred_check
          %p222 = pneg %p65
        $region34: #{tpu_custom_call.1} parent=31 // pred_check_branch
          %224 = sbr.rel (%p222) target = $region36
        $region35: #{tpu_custom_call.1} parent=31 // pred_region
          %225 = dma.done %s218, 512
        $region36: #{tpu_custom_call.1} parent=31 // pred_fallthru
          _
        %s226 = sand.u32 %s80, 1
        %s227 = scalar_lea.sflag [#allocation7], %s226
        %s228 = sand.u32 %s80, 1
        %s229 = smul.addr %s228, 64
        %s230 = scalar_lea.vmem [#allocation6], %s229
        // Predicated region
        $region37: #{tpu_custom_call.1} parent=31 // pred_check
          %p231 = pneg %p93
        $region38: #{tpu_custom_call.1} parent=31 // pred_check_branch
          %233 = sbr.rel (%p231) target = $region40
        $region39: #{tpu_custom_call.1} parent=31 // pred_region
          %234 = dma.done %s227, 1024
        $region40: #{tpu_custom_call.1} parent=31 // pred_fallthru
          _
        %s235 = sand.u32 %s52, 1
        %s236 = scalar_lea.sflag [#allocation4], %s235
        %s237 = sand.u32 %s52, 1
        %s238 = smul.addr %s237, 32
        %s239 = scalar_lea.vmem [#allocation3], %s238
        %p240 = pneg %p65
        %p241 = pneg %p62
        %s242 = sand.u32 %s80, 1
        %s243 = scalar_lea.sflag [#allocation7], %s242
        %s244 = sand.u32 %s80, 1
        %s245 = smul.addr %s244, 64
        %s246 = scalar_lea.vmem [#allocation6], %s245
        %p247 = pneg %p93
        %p248 = pneg %p90
        %p249 = pneg %p114
        %p250 = pneg %p111
        %p251 = pneg %p140
        %p252 = pneg %p137
        %s253 = smul.u32 16, %s28
        %s254 = smul.u32 16, %s26
        %p256 = scmp.eq.s32.totalorder %s27, 0
        %p257 = scmp.eq.s32.totalorder %s28, 0
        %p258 = pnand %p256, %p257
        %p259 = pneg %p258
        // Predicated region
        $region41: #{tpu_custom_call.1} parent=31 // pred_check
          _
        $region42: #{tpu_custom_call.1} parent=31 // pred_check_branch
          %261 = sbr.rel (%p258) target = $region44
        $region43: #{tpu_custom_call.1} parent=31 // pred_region
          %262 = vst [vmem:[#allocation8] sm:$0xff] 0.0
          %263 = vst [vmem:[#allocation8 + $0x8] sm:$0xff] 0.0
          %264 = vst [vmem:[#allocation8 + $0x10] sm:$0xff] 0.0
          %265 = vst [vmem:[#allocation8 + $0x18] sm:$0xff] 0.0
          %266 = vst [vmem:[#allocation8 + $0x20] sm:$0xff] 0.0
          %267 = vst [vmem:[#allocation8 + $0x28] sm:$0xff] 0.0
          %268 = vst [vmem:[#allocation8 + $0x30] sm:$0xff] 0.0
          %269 = vst [vmem:[#allocation8 + $0x38] sm:$0xff] 0.0
          %270 = vst [vmem:[#allocation8 + $0x40] sm:$0xff] 0.0
          %271 = vst [vmem:[#allocation8 + $0x48] sm:$0xff] 0.0
          %272 = vst [vmem:[#allocation8 + $0x50] sm:$0xff] 0.0
          %273 = vst [vmem:[#allocation8 + $0x58] sm:$0xff] 0.0
          %274 = vst [vmem:[#allocation8 + $0x60] sm:$0xff] 0.0
          %275 = vst [vmem:[#allocation8 + $0x68] sm:$0xff] 0.0
          %276 = vst [vmem:[#allocation8 + $0x70] sm:$0xff] 0.0
          %277 = vst [vmem:[#allocation8 + $0x78] sm:$0xff] 0.0
        $region44: #{tpu_custom_call.1} parent=31 // pred_fallthru
          _
        // Predicated region
        $region45: #{tpu_custom_call.1} parent=31 // pred_check
          %p278 = pneg %p257
        $region46: #{tpu_custom_call.1} parent=31 // pred_check_branch
          %280 = sbr.rel (%p278) target = $region48
        $region47: #{tpu_custom_call.1} parent=31 // pred_region
          %281 = vst [vmem:[#allocation2] sm:$0xff] 0.0
          %282 = vst [vmem:[#allocation2 + $0x8] sm:$0xff] 0.0
          %283 = vst [vmem:[#allocation2 + $0x10] sm:$0xff] 0.0
          %284 = vst [vmem:[#allocation2 + $0x18] sm:$0xff] 0.0
          %285 = vst [vmem:[#allocation2 + $0x20] sm:$0xff] 0.0
          %286 = vst [vmem:[#allocation2 + $0x28] sm:$0xff] 0.0
          %287 = vst [vmem:[#allocation2 + $0x30] sm:$0xff] 0.0
          %288 = vst [vmem:[#allocation2 + $0x38] sm:$0xff] 0.0
          %289 = vst [vmem:[#allocation2 + $0x40] sm:$0xff] 0.0
          %290 = vst [vmem:[#allocation2 + $0x48] sm:$0xff] 0.0
          %291 = vst [vmem:[#allocation2 + $0x50] sm:$0xff] 0.0
          %292 = vst [vmem:[#allocation2 + $0x58] sm:$0xff] 0.0
          %293 = vst [vmem:[#allocation2 + $0x60] sm:$0xff] 0.0
          %294 = vst [vmem:[#allocation2 + $0x68] sm:$0xff] 0.0
          %295 = vst [vmem:[#allocation2 + $0x70] sm:$0xff] 0.0
          %296 = vst [vmem:[#allocation2 + $0x78] sm:$0xff] 0.0
        $region48: #{tpu_custom_call.1} parent=31 // pred_fallthru
          _
        %v297 = vld [vmem:[%s221] sm:$0xff]
        %v298 = vld [vmem:[%s221 + $0x8] sm:$0xff]
        %v299 = vld [vmem:[%s221 + $0x10] sm:$0xff]
        %v300 = vld [vmem:[%s221 + $0x18] sm:$0xff]
        %v301 = vunpack.c.l.s8.bf16 %v297
        %v302 = vunpack.c.h.s8.bf16 %v297
        %v303 = vunpack.c.l.s8.bf16 %v298
        %v304 = vunpack.c.h.s8.bf16 %v298
        %v305 = vunpack.c.l.s8.bf16 %v299
        %v306 = vunpack.c.h.s8.bf16 %v299
        %v307 = vunpack.c.l.s8.bf16 %v300
        %v308 = vunpack.c.h.s8.bf16 %v300
        %v309 = vld [vmem:[#allocation2] sm:$0xff]
        %v310 = vld [vmem:[#allocation2 + $0x8] sm:$0xff]
        %v311 = vld [vmem:[#allocation2 + $0x10] sm:$0xff]
        %v312 = vld [vmem:[#allocation2 + $0x18] sm:$0xff]
        %v313 = vld [vmem:[#allocation2 + $0x20] sm:$0xff]
        %v314 = vld [vmem:[#allocation2 + $0x28] sm:$0xff]
        %v315 = vld [vmem:[#allocation2 + $0x30] sm:$0xff]
        %v316 = vld [vmem:[#allocation2 + $0x38] sm:$0xff]
        %v317 = vld [vmem:[#allocation2 + $0x40] sm:$0xff]
        %v318 = vld [vmem:[#allocation2 + $0x48] sm:$0xff]
        %v319 = vld [vmem:[#allocation2 + $0x50] sm:$0xff]
        %v320 = vld [vmem:[#allocation2 + $0x58] sm:$0xff]
        %v321 = vld [vmem:[#allocation2 + $0x60] sm:$0xff]
        %v322 = vld [vmem:[#allocation2 + $0x68] sm:$0xff]
        %v323 = vld [vmem:[#allocation2 + $0x70] sm:$0xff]
        %v324 = vld [vmem:[#allocation2 + $0x78] sm:$0xff]
        %v325 = vld [vmem:[%s230] sm:$0xf]
        %v326 = vld [vmem:[%s230 + $0x4] sm:$0xf]
        %v327 = vld [vmem:[%s230 + $0x8] sm:$0xf]
        %v328 = vld [vmem:[%s230 + $0xc] sm:$0xf]
        %v329 = vld [vmem:[%s230 + $0x10] sm:$0xf]
        %v330 = vld [vmem:[%s230 + $0x14] sm:$0xf]
        %v331 = vld [vmem:[%s230 + $0x18] sm:$0xf]
        %v332 = vld [vmem:[%s230 + $0x1c] sm:$0xf]
        %v333 = vld [vmem:[%s230 + $0x20] sm:$0xf]
        %v334 = vld [vmem:[%s230 + $0x24] sm:$0xf]
        %v335 = vld [vmem:[%s230 + $0x28] sm:$0xf]
        %v336 = vld [vmem:[%s230 + $0x2c] sm:$0xf]
        %v337 = vld [vmem:[%s230 + $0x30] sm:$0xf]
        %v338 = vld [vmem:[%s230 + $0x34] sm:$0xf]
        %v339 = vld [vmem:[%s230 + $0x38] sm:$0xf]
        %v340 = vld [vmem:[%s230 + $0x3c] sm:$0xf]
        %v357 = vunpack.c.l.b16 %v325
        %v358 = vunpack.c.l.b16 %v326
        %v359 = vunpack.c.l.b16 %v327
        %v360 = vunpack.c.l.b16 %v328
        %v361 = vunpack.c.l.b16 %v329
        %v362 = vunpack.c.l.b16 %v330
        %v363 = vunpack.c.l.b16 %v331
        %v364 = vunpack.c.l.b16 %v332
        %v365 = vunpack.c.l.b16 %v333
        %v366 = vunpack.c.l.b16 %v334
        %v367 = vunpack.c.l.b16 %v335
        %v368 = vunpack.c.l.b16 %v336
        %v369 = vunpack.c.l.b16 %v337
        %v370 = vunpack.c.l.b16 %v338
        %v371 = vunpack.c.l.b16 %v339
        %v372 = vunpack.c.l.b16 %v340
        %v373 = vpack.c.b16 %v358, %v357
        %v374 = vpack.c.b16 %v360, %v359
        %v375 = vpack.c.b16 %v362, %v361
        %v376 = vpack.c.b16 %v364, %v363
        %v377 = vpack.c.b16 %v366, %v365
        %v378 = vpack.c.b16 %v368, %v367
        %v379 = vpack.c.b16 %v370, %v369
        %v380 = vpack.c.b16 %v372, %v371
        %389 = vmatprep.subr.bf16.mxu0 0
        %390 = vmatpush1.bf16.msra.mxu0 %v373
        %391 = vmatprep.subr.bf16.mxu0 0
        %392 = vmatpush1.bf16.msra.mxu0 %v374
        %393 = vmatprep.subr.bf16.mxu0 0
        %394 = vmatpush1.bf16.msra.mxu0 %v375
        %395 = vmatprep.subr.bf16.mxu0 0
        %396 = vmatpush1.bf16.msra.mxu0 %v376
        %397 = vmatprep.subr.bf16.mxu0 0
        %398 = vmatpush1.bf16.msra.mxu0 %v377
        %399 = vmatprep.subr.bf16.mxu0 0
        %400 = vmatpush1.bf16.msra.mxu0 %v378
        %401 = vmatprep.subr.bf16.mxu0 0
        %402 = vmatpush1.bf16.msra.mxu0 %v379
        %403 = vmatprep.subr.bf16.mxu0 0
        %404 = vmatpush1.bf16.msra.mxu0 %v380
        %405 = vmatprep.subr.bf16.mxu0 0
        %406 = vmatpush1.bf16.msra.mxu0 0
        %407 = vmatprep.subr.bf16.mxu0 0
        %408 = vmatpush1.bf16.msra.mxu0 0
        %409 = vmatprep.subr.bf16.mxu0 0
        %410 = vmatpush1.bf16.msra.mxu0 0
        %411 = vmatprep.subr.bf16.mxu0 0
        %412 = vmatpush1.bf16.msra.mxu0 0
        %413 = vmatprep.subr.bf16.mxu0 0
        %414 = vmatpush1.bf16.msra.mxu0 0
        %415 = vmatprep.subr.bf16.mxu0 0
        %416 = vmatpush1.bf16.msra.mxu0 0
        %417 = vmatprep.subr.bf16.mxu0 0
        %418 = vmatpush1.bf16.msra.mxu0 0
        %419 = vmatprep.subr.bf16.mxu0 0
        %420 = vmatpush1.bf16.msra.mxu0 0
        %421 = vmatprep.mubr.bf16.mxu0 0
        %422 = vmatmul.mubr.bf16.gmra.mrb[0].mxu0 %v301
        %v423 = vpop.f32.mrb[0].mxu0
        %v424 = vadd.f32 0.0, %v423
        %v425 = vpop.f32.mrb[0].mxu0
        %v426 = vpop.f32.mrb[0].mxu0
        %v427 = vadd.f32 0.0, %v426
        %v428 = vpop.f32.mrb[0].mxu0
        %429 = vmatprep.mubr.bf16.mxu0 0
        %430 = vmatmul.mubr.bf16.gmra.mrb[0].mxu0 %v302
        %v431 = vpop.f32.mrb[0].mxu0
        %v432 = vadd.f32 0.0, %v431
        %v433 = vpop.f32.mrb[0].mxu0
        %v434 = vpop.f32.mrb[0].mxu0
        %v435 = vadd.f32 0.0, %v434
        %v436 = vpop.f32.mrb[0].mxu0
        %437 = vmatprep.mubr.bf16.mxu0 0
        %438 = vmatmul.mubr.bf16.gmra.mrb[0].mxu0 %v303
        %v439 = vpop.f32.mrb[0].mxu0
        %v440 = vadd.f32 0.0, %v439
        %v441 = vpop.f32.mrb[0].mxu0
        %v442 = vpop.f32.mrb[0].mxu0
        %v443 = vadd.f32 0.0, %v442
        %v444 = vpop.f32.mrb[0].mxu0
        %445 = vmatprep.mubr.bf16.mxu0 0
        %446 = vmatmul.mubr.bf16.gmra.mrb[0].mxu0 %v304
        %v447 = vpop.f32.mrb[0].mxu0
        %v448 = vadd.f32 0.0, %v447
        %v449 = vpop.f32.mrb[0].mxu0
        %v450 = vpop.f32.mrb[0].mxu0
        %v451 = vadd.f32 0.0, %v450
        %v452 = vpop.f32.mrb[0].mxu0
        %453 = vmatprep.mubr.bf16.mxu0 0
        %454 = vmatmul.mubr.bf16.gmra.mrb[0].mxu0 %v305
        %v455 = vpop.f32.mrb[0].mxu0
        %v456 = vadd.f32 0.0, %v455
        %v457 = vpop.f32.mrb[0].mxu0
        %v458 = vpop.f32.mrb[0].mxu0
        %v459 = vadd.f32 0.0, %v458
        %v460 = vpop.f32.mrb[0].mxu0
        %461 = vmatprep.mubr.bf16.mxu0 0
        %462 = vmatmul.mubr.bf16.gmra.mrb[0].mxu0 %v306
        %v463 = vpop.f32.mrb[0].mxu0
        %v464 = vadd.f32 0.0, %v463
        %v465 = vpop.f32.mrb[0].mxu0
        %v466 = vpop.f32.mrb[0].mxu0
        %v467 = vadd.f32 0.0, %v466
        %v468 = vpop.f32.mrb[0].mxu0
        %469 = vmatprep.mubr.bf16.mxu0 0
        %470 = vmatmul.mubr.bf16.gmra.mrb[0].mxu0 %v307
        %v471 = vpop.f32.mrb[0].mxu0
        %v472 = vadd.f32 0.0, %v471
        %v473 = vpop.f32.mrb[0].mxu0
        %v474 = vpop.f32.mrb[0].mxu0
        %v475 = vadd.f32 0.0, %v474
        %v476 = vpop.f32.mrb[0].mxu0
        %477 = vmatprep.mubr.bf16.mxu0 0
        %478 = vmatmul.mubr.bf16.gmra.mrb[0].mxu0 %v308
        %v479 = vpop.f32.mrb[0].mxu0
        %v480 = vadd.f32 0.0, %v479
        %v481 = vpop.f32.mrb[0].mxu0
        %v482 = vpop.f32.mrb[0].mxu0
        %v483 = vadd.f32 0.0, %v482
        %v484 = vpop.f32.mrb[0].mxu0
        %485 = vdwg.mxu0
        %v486 = vadd.f32 %v309, %v424
        %v487 = vadd.f32 %v310, %v427
        %v488 = vadd.f32 %v311, %v432
        %v489 = vadd.f32 %v312, %v435
        %v490 = vadd.f32 %v313, %v440
        %v491 = vadd.f32 %v314, %v443
        %v492 = vadd.f32 %v315, %v448
        %v493 = vadd.f32 %v316, %v451
        %v494 = vadd.f32 %v317, %v456
        %v495 = vadd.f32 %v318, %v459
        %v496 = vadd.f32 %v319, %v464
        %v497 = vadd.f32 %v320, %v467
        %v498 = vadd.f32 %v321, %v472
        %v499 = vadd.f32 %v322, %v475
        %v500 = vadd.f32 %v323, %v480
        %v501 = vadd.f32 %v324, %v483
        %502 = vst [vmem:[#allocation2] sm:$0xff] %v486
        %503 = vst [vmem:[#allocation2 + $0x8] sm:$0xff] %v487
        %504 = vst [vmem:[#allocation2 + $0x10] sm:$0xff] %v488
        %505 = vst [vmem:[#allocation2 + $0x18] sm:$0xff] %v489
        %506 = vst [vmem:[#allocation2 + $0x20] sm:$0xff] %v490
        %507 = vst [vmem:[#allocation2 + $0x28] sm:$0xff] %v491
        %508 = vst [vmem:[#allocation2 + $0x30] sm:$0xff] %v492
        %509 = vst [vmem:[#allocation2 + $0x38] sm:$0xff] %v493
        %510 = vst [vmem:[#allocation2 + $0x40] sm:$0xff] %v494
        %511 = vst [vmem:[#allocation2 + $0x48] sm:$0xff] %v495
        %512 = vst [vmem:[#allocation2 + $0x50] sm:$0xff] %v496
        %513 = vst [vmem:[#allocation2 + $0x58] sm:$0xff] %v497
        %514 = vst [vmem:[#allocation2 + $0x60] sm:$0xff] %v498
        %515 = vst [vmem:[#allocation2 + $0x68] sm:$0xff] %v499
        %516 = vst [vmem:[#allocation2 + $0x70] sm:$0xff] %v500
        %517 = vst [vmem:[#allocation2 + $0x78] sm:$0xff] %v501
        // Predicated region
        $region49: #{tpu_custom_call.1} parent=31 // pred_check
          %p518 = pneg %p257
        $region50: #{tpu_custom_call.1} parent=31 // pred_check_branch
          %520 = sbr.rel (%p518) target = $region52
        $region51: #{tpu_custom_call.1} parent=31 // pred_region
          %v521 = vld [vmem:[#allocation2] sm:$0xff]
          %v522 = vld [vmem:[#allocation2 + $0x8] sm:$0xff]
          %v523 = vld [vmem:[#allocation2 + $0x10] sm:$0xff]
          %v524 = vld [vmem:[#allocation2 + $0x18] sm:$0xff]
          %v525 = vld [vmem:[#allocation2 + $0x20] sm:$0xff]
          %v526 = vld [vmem:[#allocation2 + $0x28] sm:$0xff]
          %v527 = vld [vmem:[#allocation2 + $0x30] sm:$0xff]
          %v528 = vld [vmem:[#allocation2 + $0x38] sm:$0xff]
          %v529 = vld [vmem:[#allocation2 + $0x40] sm:$0xff]
          %v530 = vld [vmem:[#allocation2 + $0x48] sm:$0xff]
          %v531 = vld [vmem:[#allocation2 + $0x50] sm:$0xff]
          %v532 = vld [vmem:[#allocation2 + $0x58] sm:$0xff]
          %v533 = vld [vmem:[#allocation2 + $0x60] sm:$0xff]
          %v534 = vld [vmem:[#allocation2 + $0x68] sm:$0xff]
          %v535 = vld [vmem:[#allocation2 + $0x70] sm:$0xff]
          %v536 = vld [vmem:[#allocation2 + $0x78] sm:$0xff]
          %v537 = vmax.f32 %v521, 1.0
          %v538 = vmax.f32 %v522, 1.0
          %v539 = vmax.f32 %v523, 1.0
          %v540 = vmax.f32 %v524, 1.0
          %v541 = vmax.f32 %v525, 1.0
          %v542 = vmax.f32 %v526, 1.0
          %v543 = vmax.f32 %v527, 1.0
          %v544 = vmax.f32 %v528, 1.0
          %v545 = vmax.f32 %v529, 1.0
          %v546 = vmax.f32 %v530, 1.0
          %v547 = vmax.f32 %v531, 1.0
          %v548 = vmax.f32 %v532, 1.0
          %v549 = vmax.f32 %v533, 1.0
          %v550 = vmax.f32 %v534, 1.0
          %v551 = vmax.f32 %v535, 1.0
          %v552 = vmax.f32 %v536, 1.0
          %v553 = vrcp.pop %v537
          %v554 = vrcp.pop %v538
          %v555 = vrcp.pop %v539
          %v556 = vrcp.pop %v540
          %v557 = vrcp.pop %v541
          %v558 = vrcp.pop %v542
          %v559 = vrcp.pop %v543
          %v560 = vrcp.pop %v544
          %v561 = vrcp.pop %v545
          %v562 = vrcp.pop %v546
          %v563 = vrcp.pop %v547
          %v564 = vrcp.pop %v548
          %v565 = vrcp.pop %v549
          %v566 = vrcp.pop %v550
          %v567 = vrcp.pop %v551
          %v568 = vrcp.pop %v552
          %v569 = vld [vmem:[#allocation8] sm:$0xff]
          %v570 = vld [vmem:[#allocation8 + $0x8] sm:$0xff]
          %v571 = vld [vmem:[#allocation8 + $0x10] sm:$0xff]
          %v572 = vld [vmem:[#allocation8 + $0x18] sm:$0xff]
          %v573 = vld [vmem:[#allocation8 + $0x20] sm:$0xff]
          %v574 = vld [vmem:[#allocation8 + $0x28] sm:$0xff]
          %v575 = vld [vmem:[#allocation8 + $0x30] sm:$0xff]
          %v576 = vld [vmem:[#allocation8 + $0x38] sm:$0xff]
          %v577 = vld [vmem:[#allocation8 + $0x40] sm:$0xff]
          %v578 = vld [vmem:[#allocation8 + $0x48] sm:$0xff]
          %v579 = vld [vmem:[#allocation8 + $0x50] sm:$0xff]
          %v580 = vld [vmem:[#allocation8 + $0x58] sm:$0xff]
          %v581 = vld [vmem:[#allocation8 + $0x60] sm:$0xff]
          %v582 = vld [vmem:[#allocation8 + $0x68] sm:$0xff]
          %v583 = vld [vmem:[#allocation8 + $0x70] sm:$0xff]
          %v584 = vld [vmem:[#allocation8 + $0x78] sm:$0xff]
          %586 = vset.pattern.permute.xlu0 32
          %587 = vperm.xlu0 %586, %v553
          %v588 = vpop.permute.xlu0 %587
          %591 = vset.pattern.permute.xlu0 32
          %592 = vperm.xlu0 %591, %v554
          %v593 = vpop.permute.xlu0 %592
          %596 = vset.pattern.permute.xlu0 32
          %597 = vperm.xlu0 %596, %v555
          %v598 = vpop.permute.xlu0 %597
          %601 = vset.pattern.permute.xlu0 32
          %602 = vperm.xlu0 %601, %v556
          %v603 = vpop.permute.xlu0 %602
          %606 = vset.pattern.permute.xlu0 32
          %607 = vperm.xlu0 %606, %v557
          %v608 = vpop.permute.xlu0 %607
          %611 = vset.pattern.permute.xlu0 32
          %612 = vperm.xlu0 %611, %v558
          %v613 = vpop.permute.xlu0 %612
          %616 = vset.pattern.permute.xlu0 32
          %617 = vperm.xlu0 %616, %v559
          %v618 = vpop.permute.xlu0 %617
          %621 = vset.pattern.permute.xlu0 32
          %622 = vperm.xlu0 %621, %v560
          %v623 = vpop.permute.xlu0 %622
          %626 = vset.pattern.permute.xlu0 32
          %627 = vperm.xlu0 %626, %v561
          %v628 = vpop.permute.xlu0 %627
          %631 = vset.pattern.permute.xlu0 32
          %632 = vperm.xlu0 %631, %v562
          %v633 = vpop.permute.xlu0 %632
          %636 = vset.pattern.permute.xlu0 32
          %637 = vperm.xlu0 %636, %v563
          %v638 = vpop.permute.xlu0 %637
          %641 = vset.pattern.permute.xlu0 32
          %642 = vperm.xlu0 %641, %v564
          %v643 = vpop.permute.xlu0 %642
          %646 = vset.pattern.permute.xlu0 32
          %647 = vperm.xlu0 %646, %v565
          %v648 = vpop.permute.xlu0 %647
          %651 = vset.pattern.permute.xlu0 32
          %652 = vperm.xlu0 %651, %v566
          %v653 = vpop.permute.xlu0 %652
          %656 = vset.pattern.permute.xlu0 32
          %657 = vperm.xlu0 %656, %v567
          %v658 = vpop.permute.xlu0 %657
          %661 = vset.pattern.permute.xlu0 32
          %662 = vperm.xlu0 %661, %v568
          %v663 = vpop.permute.xlu0 %662
          %v665 = vmul.f32 %v521, %v588
          %v666 = vmul.f32 %v522, %v593
          %v667 = vmul.f32 %v523, %v598
          %v668 = vmul.f32 %v524, %v603
          %v669 = vmul.f32 %v525, %v608
          %v670 = vmul.f32 %v526, %v613
          %v671 = vmul.f32 %v527, %v618
          %v672 = vmul.f32 %v528, %v623
          %v673 = vmul.f32 %v529, %v628
          %v674 = vmul.f32 %v530, %v633
          %v675 = vmul.f32 %v531, %v638
          %v676 = vmul.f32 %v532, %v643
          %v677 = vmul.f32 %v533, %v648
          %v678 = vmul.f32 %v534, %v653
          %v679 = vmul.f32 %v535, %v658
          %v680 = vmul.f32 %v536, %v663
          %v681 = vadd.f32 %v569, %v665
          %v682 = vadd.f32 %v570, %v666
          %v683 = vadd.f32 %v571, %v667
          %v684 = vadd.f32 %v572, %v668
          %v685 = vadd.f32 %v573, %v669
          %v686 = vadd.f32 %v574, %v670
          %v687 = vadd.f32 %v575, %v671
          %v688 = vadd.f32 %v576, %v672
          %v689 = vadd.f32 %v577, %v673
          %v690 = vadd.f32 %v578, %v674
          %v691 = vadd.f32 %v579, %v675
          %v692 = vadd.f32 %v580, %v676
          %v693 = vadd.f32 %v581, %v677
          %v694 = vadd.f32 %v582, %v678
          %v695 = vadd.f32 %v583, %v679
          %v696 = vadd.f32 %v584, %v680
          %697 = vst [vmem:[#allocation8] sm:$0xff] %v681
          %698 = vst [vmem:[#allocation8 + $0x8] sm:$0xff] %v682
          %699 = vst [vmem:[#allocation8 + $0x10] sm:$0xff] %v683
          %700 = vst [vmem:[#allocation8 + $0x18] sm:$0xff] %v684
          %701 = vst [vmem:[#allocation8 + $0x20] sm:$0xff] %v685
          %702 = vst [vmem:[#allocation8 + $0x28] sm:$0xff] %v686
          %703 = vst [vmem:[#allocation8 + $0x30] sm:$0xff] %v687
          %704 = vst [vmem:[#allocation8 + $0x38] sm:$0xff] %v688
          %705 = vst [vmem:[#allocation8 + $0x40] sm:$0xff] %v689
          %706 = vst [vmem:[#allocation8 + $0x48] sm:$0xff] %v690
          %707 = vst [vmem:[#allocation8 + $0x50] sm:$0xff] %v691
          %708 = vst [vmem:[#allocation8 + $0x58] sm:$0xff] %v692
          %709 = vst [vmem:[#allocation8 + $0x60] sm:$0xff] %v693
          %710 = vst [vmem:[#allocation8 + $0x68] sm:$0xff] %v694
          %711 = vst [vmem:[#allocation8 + $0x70] sm:$0xff] %v695
          %712 = vst [vmem:[#allocation8 + $0x78] sm:$0xff] %v696
        $region52: #{tpu_custom_call.1} parent=31 // pred_fallthru
          _
        %p713 = scmp.eq.s32.totalorder %s27, 1
        %p714 = pnand %p713, %p257
        %p715 = pneg %p714
        // Predicated region
        $region53: #{tpu_custom_call.1} parent=31 // pred_check
          _
        $region54: #{tpu_custom_call.1} parent=31 // pred_check_branch
          %717 = sbr.rel (%p714) target = $region56
        $region55: #{tpu_custom_call.1} parent=31 // pred_region
          %v718 = vld [vmem:[#allocation8] sm:$0xff]
          %v719 = vld [vmem:[#allocation8 + $0x8] sm:$0xff]
          %v720 = vld [vmem:[#allocation8 + $0x10] sm:$0xff]
          %v721 = vld [vmem:[#allocation8 + $0x18] sm:$0xff]
          %v722 = vld [vmem:[#allocation8 + $0x20] sm:$0xff]
          %v723 = vld [vmem:[#allocation8 + $0x28] sm:$0xff]
          %v724 = vld [vmem:[#allocation8 + $0x30] sm:$0xff]
          %v725 = vld [vmem:[#allocation8 + $0x38] sm:$0xff]
          %v726 = vld [vmem:[#allocation8 + $0x40] sm:$0xff]
          %v727 = vld [vmem:[#allocation8 + $0x48] sm:$0xff]
          %v728 = vld [vmem:[#allocation8 + $0x50] sm:$0xff]
          %v729 = vld [vmem:[#allocation8 + $0x58] sm:$0xff]
          %v730 = vld [vmem:[#allocation8 + $0x60] sm:$0xff]
          %v731 = vld [vmem:[#allocation8 + $0x68] sm:$0xff]
          %v732 = vld [vmem:[#allocation8 + $0x70] sm:$0xff]
          %v733 = vld [vmem:[#allocation8 + $0x78] sm:$0xff]
          %v734 = vld [vmem:[%s2] sm:$0x1]
          %v736 = vlaneseq
          %v737 = vshrl.u32 %v736, 7
          %v738 = vsub.s32 0, %v737
          %v739 = vrot.slane %v734, %v738
          %v741 = vadd.f32 %v718, %v739
          %v742 = vadd.f32 %v719, %v739
          %v743 = vadd.f32 %v720, %v739
          %v744 = vadd.f32 %v721, %v739
          %v745 = vadd.f32 %v722, %v739
          %v746 = vadd.f32 %v723, %v739
          %v747 = vadd.f32 %v724, %v739
          %v748 = vadd.f32 %v725, %v739
          %v749 = vadd.f32 %v726, %v739
          %v750 = vadd.f32 %v727, %v739
          %v751 = vadd.f32 %v728, %v739
          %v752 = vadd.f32 %v729, %v739
          %v753 = vadd.f32 %v730, %v739
          %v754 = vadd.f32 %v731, %v739
          %v755 = vadd.f32 %v732, %v739
          %v756 = vadd.f32 %v733, %v739
          %757 = vst [vmem:[#allocation8] sm:$0xff] %v741
          %758 = vst [vmem:[#allocation8 + $0x8] sm:$0xff] %v742
          %759 = vst [vmem:[#allocation8 + $0x10] sm:$0xff] %v743
          %760 = vst [vmem:[#allocation8 + $0x18] sm:$0xff] %v744
          %761 = vst [vmem:[#allocation8 + $0x20] sm:$0xff] %v745
          %762 = vst [vmem:[#allocation8 + $0x28] sm:$0xff] %v746
          %763 = vst [vmem:[#allocation8 + $0x30] sm:$0xff] %v747
          %764 = vst [vmem:[#allocation8 + $0x38] sm:$0xff] %v748
          %765 = vst [vmem:[#allocation8 + $0x40] sm:$0xff] %v749
          %766 = vst [vmem:[#allocation8 + $0x48] sm:$0xff] %v750
          %767 = vst [vmem:[#allocation8 + $0x50] sm:$0xff] %v751
          %768 = vst [vmem:[#allocation8 + $0x58] sm:$0xff] %v752
          %769 = vst [vmem:[#allocation8 + $0x60] sm:$0xff] %v753
          %770 = vst [vmem:[#allocation8 + $0x68] sm:$0xff] %v754
          %771 = vst [vmem:[#allocation8 + $0x70] sm:$0xff] %v755
          %772 = vst [vmem:[#allocation8 + $0x78] sm:$0xff] %v756
        $region56: #{tpu_custom_call.1} parent=31 // pred_fallthru
          _
        // Predicated region
        $region57: #{tpu_custom_call.1} parent=31 // pred_check
          %p773 = pneg %p137
        $region58: #{tpu_custom_call.1} parent=31 // pred_check_branch
          %775 = sbr.rel (%p773) target = $region60
        $region59: #{tpu_custom_call.1} parent=31 // pred_region
          %s776 = smul.u32 16, %s26
          %s778 = ssub.s32 2048, 2048
          %779 = vsyncadd [#allocation5], %s778
          %s780 = smul.addr %s776, 128
          %s781 = scalar_lea.hbm %s3, %s780
          %s782 = sshll.u32 [#allocation8], 4
          %s783 = int_to_ptr.vmem [resolvable:$true] %s782
          %788 = dma.vmem_to_hbm [thread:$0]  %s783, 2048, %s781, [#allocation5], 128, 128, 8
        $region60: #{tpu_custom_call.1} parent=31 // pred_fallthru
          _
        // Predicated region
        $region61: #{tpu_custom_call.1} parent=31 // pred_check
          %p789 = pneg %p137
        $region62: #{tpu_custom_call.1} parent=31 // pred_check_branch
          %791 = sbr.rel (%p789) target = $region64
        $region63: #{tpu_custom_call.1} parent=31 // pred_region
          %792 = dma.done [#allocation5], 2048
        $region64: #{tpu_custom_call.1} parent=31 // pred_fallthru
          _
      $region32: #{tpu_custom_call.1} parent=5 // pred_fallthru
        _
      %p793 = scmp.le.s32.totalorder 2, %s16
      // Predicated region
      $region65: #{tpu_custom_call.1} parent=5 // pred_check
        %p794 = pneg %p793
      $region66: #{tpu_custom_call.1} parent=5 // pred_check_branch
        %796 = sbr.rel (%p794) target = $region68
      $region67: #{tpu_custom_call.1} parent=5 // pred_region
        %s797 = ssub.s32 %s16, 2
      $region68: #{tpu_custom_call.1} parent=5 // pred_fallthru
        _
    $region6: #{tpu_custom_call.1} parent=1 // loop_footer
      %s20 = sadd.s32 1, %s16
    $region7: #{tpu_custom_call.1} parent=1 // loop_footer_branch
      %15 = sbr.rel target = $region3
    $region8: #{tpu_custom_call.1} parent=1 // loop_exit
      _
    %798 = vsyncpa [#allocation4], 1
    %s799 = scalar_lea.sflag [#allocation4], 1
    %800 = vsyncpa %s799, 1
    %801 = vsyncpa [#allocation7], 1
    %s802 = scalar_lea.sflag [#allocation7], 1
    %803 = vsyncpa %s802, 1
    %804 = vsyncpa [#allocation5], 1
    %s805 = scalar_lea.sflag [#allocation5], 1
    %806 = vsyncpa %s805, 1

</llo_original>
